<compile_context>
chip_gen: v6e
topology: v6e:2x2x1
jax: 0.10.0
libtpu: 0.0.40
codegen_flags: <defaults>
</compile_context>

<pallas_src>
import functools

import jax
import jax.numpy as jnp
from jax.experimental import pallas as pl
from jax.experimental.pallas import tpu as pltpu


# ---- layer sizes from the PyTorch module -----------------------------------
def layer_dims(hiddens):
    return [(hiddens, 1024), (1024, 128), (128, 64), (64, 16), (16, 1)]


# -----------------------------------------------------------------------------
# Kernel: one batch tile of  y = x @ W_eff + b_eff
# -----------------------------------------------------------------------------
def folded_mlp_kernel(x_ref, w_ref, b_ref, o_ref):
    """x_ref: (tb, H)  x's native dtype, VMEM (batch-tiled, boundary-clipped)
       w_ref: (H, 1)   compute dtype, VMEM (grid-invariant folded weight)
       b_ref: (1, 1)   f32, SMEM (folded bias, scalar)
       o_ref: (tb, 1)  f32, VMEM
    """
    x = x_ref[...]
    w = w_ref[...]
    if x.dtype != w.dtype:
        # In-kernel cast only (VPU, hidden under the HBM stream); never a
        # separate wrapper-side astype pass over x in HBM.
        x = x.astype(w.dtype)
    y = jnp.dot(x, w, preferred_element_type=jnp.float32)
    o_ref[...] = (y + b_ref[0, 0]).astype(o_ref.dtype)


# -----------------------------------------------------------------------------
# Trace-time hardware / tiling helpers
# -----------------------------------------------------------------------------
def _round_up(n, m):
    return (n + m - 1) // m * m


def _tpu_caps():
    """Trace-time hardware query with a conservative fallback.
    Returns (vmem_capacity_bytes, n_tensorcores_for_the_parallel_grid_axis)."""
    try:
        info = pltpu.get_tpu_info()
        vmem = int(getattr(info, "vmem_capacity_bytes", 64 << 20))
    except Exception:
        vmem = 64 << 20  # conservative (v7x-sized VMEM keeps tiling safe)
    # v7x: 64 MiB VMEM per TensorCore, 2 TCs/chip; v5e/v6e: 128 MiB, 1 TC.
    n_cores = 2 if vmem <= (64 << 20) else 1
    return vmem, n_cores


def _choose_batch_tile(batch, hiddens, x_itemsize, tb_req, vmem_bytes, n_cores):
    """Static batch-tile selection.

    - never exceeds the batch (no block bigger than the array; ragged tails are
      handled by Pallas boundary clipping),
    - sublane aligned (multiple of 8) unless the whole batch is < 8,
    - double-buffered x/out tiles capped at 3/8 of VMEM capacity
      (24 MiB on v7x, 48 MiB on v5e/v6e),
    - v7x only: >= 2 grid steps, preferring an even count so the 2 TensorCores
      get balanced work on the "parallel" batch axis.
    """
    if batch <= 8:
        return batch                                  # single full-dim block
    tb = min(int(tb_req), batch)
    tb = max(8, (tb // 8) * 8)
    budget = (vmem_bytes * 3) // 8                    # pipelined x/out bytes
    per_row = 2 * hiddens * x_itemsize + 2 * 4        # double-buffered in+out
    tb = min(tb, max(8, (budget // per_row) // 8 * 8))
    if tb >= 256:
        tb = (tb // 256) * 256
    if n_cores >= 2:                                  # v7x-only core balancing
        tb = min(tb, _round_up(pl.cdiv(batch, 2), 8))
        steps = pl.cdiv(batch, tb)
        if steps > 1 and steps % 2 == 1:
            tb = min(tb, _round_up(pl.cdiv(batch, steps + 1), 8))
    return tb


def _fold_affine(params):
    """Collapse [w1,b1,...,w5,b5] (weights (in,out), biases (1,out)) into one
    (H,1) weight and (1,1) bias.  Exact for this module at inference: no
    activations, dropout == identity."""
    w_eff = params[0]
    b_eff = params[1]
    for i in range(2, len(params), 2):
        w_eff = jnp.dot(w_eff, params[i], preferred_element_type=jnp.float32)
        b_eff = (jnp.dot(b_eff, params[i], preferred_element_type=jnp.float32)
                 + params[i + 1])
    return w_eff, b_eff


# -----------------------------------------------------------------------------
# Wrapper
# -----------------------------------------------------------------------------
@functools.partial(jax.jit, static_argnames=("tb", "compute_dtype"))
def mlp_forward(x, params, *, tb=1024, compute_dtype=None):
    """x: (B, hiddens).  params: [w1,b1,...,w5,b5], weights (in,out), biases
    (1,out).  Returns (B, 1) f32 — eval-mode forward of the module.

    compute_dtype selects the MXU operand dtype for the folded weight; the x
    tile is cast in-kernel (no extra HBM pass).  Default: x.dtype."""
    B, H = x.shape
    cdt = jnp.dtype(compute_dtype) if compute_dtype is not None else x.dtype

    # Fold the five affine layers once (tiny f32 matmuls in XLA).
    w_eff, b_eff = _fold_affine(params)                  # (H,1) f32, (1,1) f32
    w_c = w_eff.astype(cdt)
    b_c = b_eff.astype(jnp.float32)                      # bias stays f32 (SMEM)

    vmem_bytes, n_cores = _tpu_caps()
    x_itemsize = x.dtype.itemsize
    tb_eff = _choose_batch_tile(B, H, x_itemsize, tb, vmem_bytes, n_cores)

    # Scoped VMEM: actual double-buffered need + headroom, >= 32 MiB (above
    # v5e's 16 MiB default scoped limit), <= ~70% of physical VMEM (leaves
    # Mosaic internal scratch / semaphore room, esp. on v7x's 64 MiB).
    need = (2 * tb_eff * H * x_itemsize + 2 * tb_eff * 4
            + 2 * H * jnp.dtype(cdt).itemsize)
    vmem_limit = int(min(max(need + (4 << 20), 32 << 20), (vmem_bytes * 7) // 10))

    return pl.pallas_call(
        folded_mlp_kernel,
        out_shape=jax.ShapeDtypeStruct((B, 1), jnp.float32),
        grid_spec=pltpu.PrefetchScalarGridSpec(
            num_scalar_prefetch=0,
            grid=(pl.cdiv(B, tb_eff),),                  # unpadded; tail clipped
            in_specs=[
                pl.BlockSpec((tb_eff, H), lambda i: (i, 0)),        # x tile
                pl.BlockSpec((H, 1), lambda i: (0, 0)),             # W_eff
                pl.BlockSpec(memory_space=pltpu.MemorySpace.SMEM),  # b_eff
            ],
            out_specs=pl.BlockSpec((tb_eff, 1), lambda i: (i, 0)),
        ),
        compiler_params=pltpu.CompilerParams(
            dimension_semantics=("parallel",),
            vmem_limit_bytes=vmem_limit,
        ),
    )(x, w_c, b_c)


# -----------------------------------------------------------------------------
# Init + pure-JAX reference (layer by layer, like the PyTorch module)
# -----------------------------------------------------------------------------
def init_params(key, hiddens):
    """nn.Linear default init (uniform(-k, k), k = 1/sqrt(fan_in)).
    Weights returned pre-transposed to (in, out); biases as (1, out)."""
    params = []
    for (fan_in, fan_out) in layer_dims(hiddens):
        key, kw, kb = jax.random.split(key, 3)
        bound = 1.0 / (fan_in ** 0.5)
        w = jax.random.uniform(kw, (fan_in, fan_out), jnp.float32, -bound, bound)
        b = jax.random.uniform(kb, (1, fan_out), jnp.float32, -bound, bound)
        params += [w, b]
    return params


def mlp_reference(x, params):
    h = x
    for i in range(0, len(params), 2):
        h = h @ params[i] + params[i + 1]
    return h


if __name__ == "__main__":
    hiddens = 32
    batch = 64

    key = jax.random.PRNGKey(0)
    key, kx, kr = jax.random.split(key, 3)
    x = jax.random.normal(kx, (batch, hiddens), jnp.float32)
    params = init_params(key, hiddens)
    ref = mlp_reference(x, params)

    # f32 path (default): exact fold of the affine stack.
    out = jax.block_until_ready(mlp_forward(x, params))
    assert out.shape == (batch, 1), out.shape
    assert jnp.allclose(out, ref, atol=1e-4, rtol=1e-4), (
        float(jnp.max(jnp.abs(out - ref))))

    # Ragged batch (exercises boundary-clipped blocks: no jnp.pad anywhere).
    xr = jax.random.normal(kr, (52, hiddens), jnp.float32)
    ref_r = mlp_reference(xr, params)
    out_r = jax.block_until_ready(mlp_forward(xr, params))
    assert out_r.shape == (52, 1), out_r.shape
    assert jnp.allclose(out_r, ref_r, atol=1e-4, rtol=1e-4), (
        float(jnp.max(jnp.abs(out_r - ref_r))))

    # bf16-operand path: weight in bf16, x cast in-kernel (no extra HBM pass).
    # Note: folded-weight bf16 error can exceed per-layer bf16 error; loose tol.
    out_bf16 = jax.block_until_ready(
        mlp_forward(x, params, compute_dtype=jnp.bfloat16))
    assert out_bf16.shape == (batch, 1), out_bf16.shape
    assert jnp.allclose(out_bf16, ref, atol=1e-2, rtol=1e-2), (
        float(jnp.max(jnp.abs(out_bf16 - ref))))

    print("KERNEL_OK")
</pallas_src>

<mosaic_0001>
module attributes {stable_mosaic.version = 11 : i64} {
  func.func @folded_mlp_kernel(%arg0: i32, %arg1: memref<32x32xf32, #tpu.memory_space<vmem>>, %arg2: memref<32x1xf32, #tpu.memory_space<vmem>>, %arg3: memref<1x1xf32, #tpu.memory_space<smem>>, %arg4: memref<32x1xf32, #tpu.memory_space<vmem>>) attributes {dimension_semantics = [#tpu.dimension_semantics<parallel>], iteration_bounds = array<i64: 2>, scalar_prefetch = 0 : i64, scratch_operands = 0 : i64, tpu.core_type = #tpu.core_type<tc>, window_params = [{transform_indices = @transform_0, window_bounds = array<i64: 32, 32>}, {pipeline_mode = #tpu.pipeline_mode<synchronous>, transform_indices = @transform_1, window_bounds = array<i64: 32, 1>}, {transform_indices = @transform_2, window_bounds = array<i64: 1, 1>}, {transform_indices = @transform_3, window_bounds = array<i64: 32, 1>}]} {
    %c0 = arith.constant 0 : index
    %c0_0 = arith.constant 0 : index
    %0 = vector.load %arg1[%c0, %c0_0] : memref<32x32xf32, #tpu.memory_space<vmem>>, vector<32x32xf32>
    %c0_1 = arith.constant 0 : index
    %c0_2 = arith.constant 0 : index
    %1 = vector.load %arg2[%c0_1, %c0_2] : memref<32x1xf32, #tpu.memory_space<vmem>>, vector<32x1xf32>
    %cst = arith.constant dense<0.000000e+00> : vector<32x1xf32>
    %2 = tpu.matmul %0, %1, %cst {dimension_numbers = #tpu.dot_dimension_numbers<[1], [0], [0], [1], [0, 0, 1, 1], [], []>} : vector<32x32xf32>, vector<32x1xf32>, vector<32x1xf32> -> vector<32x1xf32>
    %c0_3 = arith.constant 0 : index
    %c0_4 = arith.constant 0 : index
    %3 = memref.load %arg3[%c0_3, %c0_4] : memref<1x1xf32, #tpu.memory_space<smem>>
    %4 = vector.broadcast %3 : f32 to vector<32x1xf32>
    %5 = arith.addf %2, %4 : vector<32x1xf32>
    %c0_5 = arith.constant 0 : index
    %c0_6 = arith.constant 0 : index
    %6 = vector.load %arg4[%c0_5, %c0_6] : memref<32x1xf32, #tpu.memory_space<vmem>>, vector<32x1xf32>
    tpu.vector_store %arg4[%c0_5, %c0_6], %5 {strides = array<i32>} : memref<32x1xf32, #tpu.memory_space<vmem>>, vector<32x1xf32>,
    return
  }
  func.func @transform_0(%arg0: i32) -> (i32, i32) {
    %c0_i32 = arith.constant 0 : i32
    %c0_i32_0 = arith.constant 0 : i32
    return %arg0, %c0_i32 : i32, i32
  }
  func.func @transform_1(%arg0: i32) -> (i32, i32) {
    %c0_i32 = arith.constant 0 : i32
    %c0_i32_0 = arith.constant 0 : i32
    %c0_i32_1 = arith.constant 0 : i32
    return %c0_i32, %c0_i32_0 : i32, i32
  }
  func.func @transform_2(%arg0: i32) -> (i32, i32) {
    %c0_i32 = arith.constant 0 : i32
    %c0_i32_0 = arith.constant 0 : i32
    %c0_i32_1 = arith.constant 0 : i32
    return %c0_i32, %c0_i32_0 : i32, i32
  }
  func.func @transform_3(%arg0: i32) -> (i32, i32) {
    %c0_i32 = arith.constant 0 : i32
    %c0_i32_0 = arith.constant 0 : i32
    return %arg0, %c0_i32 : i32, i32
  }
}

</mosaic_0001>

<llo_original>
// kernel: mlp_forward.1
$region0: #{mlp_forward.1}
  #allocation0 [shape = 'u32[]', space=smem, size = 0x4, offset = 0x4, fixed_abs, tag = 'smem constant byte address 0x4 - core index']
  #allocation1 [shape = 'u32[144,128]{1,0:T(1,128)}', space=vmem, size = 0x12000, scoped, tag = 'internal scratch']
  #allocation2 [shape = 'f32[1,1]{1,0:T(1,128)S(6)}', space=smem, size = 0x200, scoped, tag = 'scoped memory for mlp_forward.1']
  %s0 = inlined_call_operand.vmem [shape: f32[64,32], index: 0, kind: input, shape index: {}]
  %s1 = inlined_call_operand.vmem [shape: f32[32,1], index: 1, kind: input, shape index: {}]
  %s2 = inlined_call_operand.<no memory space> [shape: f32[1,1], index: 2, kind: input, shape index: {}]
  %s3 = inlined_call_operand.vmem [shape: f32[64,1], index: 3, kind: output, shape index: {}]
  %s4 = sld [smem:[#allocation0]]
  $region45: #{mlp_forward.1} parent=0
    _
  %s6 = ssub.s32 1, %s4
  %s7 = scalar_select 0, %s6, %s4
  %8 = sst [smem:[#allocation2]] %s2
  loop: start=0, step=1, limit=4
  $region2: #{mlp_forward.1} parent=0 // loop_pre_header
    _
  $region3: #{mlp_forward.1} parent=0 // loop_header
    %s10 = sphi 0, %s14
    %p11 = scmp.ge.s32.totalorder %s10, 4
    %s20 = sphi 0, %s22
    %s23 = sphi 0, %s20
    %s24 = sphi 0, %s23
    %s40 = sphi 0, %s24
    %s44 = sphi 0, %s44
    %s46 = sphi 0, %s44
    %s47 = sphi 0, %s46
    %s61 = sphi 0, %s47
    %s65 = sphi 0, %s65
    %s67 = sphi 0, %s65
    %s68 = sphi 0, %s67
    %s82 = sphi 0, %s68
    %s88 = sphi 0, %s90
    %s91 = sphi 0, %s88
    %s92 = sphi 0, %s91
    %s108 = sphi 0, %s92
  $region4: #{mlp_forward.1} parent=0 // loop_header_branch
    %13 = sbr.rel (%p11) target = $region8
  $region5: #{mlp_forward.1} parent=0 // loop_body
    %s15 = ssub.s32 %s10, 1
    %s16 = ssub.s32 %s10, 2
    %s17 = sadd.s32 %s10, 1
    %s18 = ssub.s32 %s10, %s17
    %p19 = scmp.eq.s32.totalorder %s18, 0
    %s21 = sadd.s32 %s20, 1
    %s22 = scalar_select %p19, %s20, %s21
    %p25 = pneg %p19
    %p26 = scmp.eq.s32.totalorder %s10, 1
    %p27 = por %p25, %p26
    %p28 = scmp.ne.s32.totalorder %s20, %s23
    %p29 = scmp.eq.s32.totalorder %s10, 0
    %p30 = por %p28, %p29
    %p31 = scmp.ne.s32.totalorder %s20, %s23
    %p32 = scmp.eq.s32.totalorder %s15, 1
    %p33 = por %p31, %p32
    %p34 = scmp.ne.s32.totalorder %s23, %s24
    %p35 = scmp.eq.s32.totalorder %s15, 0
    %p36 = por %p34, %p35
    %p37 = scmp.ne.s32.totalorder %s23, %s24
    %p38 = scmp.eq.s32.totalorder %s16, 1
    %p39 = por %p37, %p38
    %p41 = scmp.ne.s32.totalorder %s24, %s40
    %p42 = scmp.eq.s32.totalorder %s16, 0
    %p43 = por %p41, %p42
    %s45 = sadd.s32 %s44, 1
    %p48 = scmp.eq.s32.totalorder %s10, 1
    %p49 = scmp.ne.s32.totalorder %s44, %s46
    %p50 = scmp.eq.s32.totalorder %s10, 0
    %p51 = por %p49, %p50
    %p52 = scmp.ne.s32.totalorder %s44, %s46
    %p53 = scmp.eq.s32.totalorder %s15, 1
    %p54 = por %p52, %p53
    %p55 = scmp.ne.s32.totalorder %s46, %s47
    %p56 = scmp.eq.s32.totalorder %s15, 0
    %p57 = por %p55, %p56
    %p58 = scmp.ne.s32.totalorder %s46, %s47
    %p59 = scmp.eq.s32.totalorder %s16, 1
    %p60 = por %p58, %p59
    %p62 = scmp.ne.s32.totalorder %s47, %s61
    %p63 = scmp.eq.s32.totalorder %s16, 0
    %p64 = por %p62, %p63
    %s66 = sadd.s32 %s65, 1
    %p69 = scmp.eq.s32.totalorder %s10, 1
    %p70 = scmp.ne.s32.totalorder %s65, %s67
    %p71 = scmp.eq.s32.totalorder %s10, 0
    %p72 = por %p70, %p71
    %p73 = scmp.ne.s32.totalorder %s65, %s67
    %p74 = scmp.eq.s32.totalorder %s15, 1
    %p75 = por %p73, %p74
    %p76 = scmp.ne.s32.totalorder %s67, %s68
    %p77 = scmp.eq.s32.totalorder %s15, 0
    %p78 = por %p76, %p77
    %p79 = scmp.ne.s32.totalorder %s67, %s68
    %p80 = scmp.eq.s32.totalorder %s16, 1
    %p81 = por %p79, %p80
    %p83 = scmp.ne.s32.totalorder %s68, %s82
    %p84 = scmp.eq.s32.totalorder %s16, 0
    %p85 = por %p83, %p84
    %s86 = ssub.s32 %s10, %s17
    %p87 = scmp.eq.s32.totalorder %s86, 0
    %s89 = sadd.s32 %s88, 1
    %s90 = scalar_select %p87, %s88, %s89
    %p93 = pneg %p87
    %p94 = scmp.eq.s32.totalorder %s10, 1
    %p95 = por %p93, %p94
    %p96 = scmp.ne.s32.totalorder %s88, %s91
    %p97 = scmp.eq.s32.totalorder %s10, 0
    %p98 = por %p96, %p97
    %p99 = scmp.ne.s32.totalorder %s88, %s91
    %p100 = scmp.eq.s32.totalorder %s15, 1
    %p101 = por %p99, %p100
    %p102 = scmp.ne.s32.totalorder %s91, %s92
    %p103 = scmp.eq.s32.totalorder %s15, 0
    %p104 = por %p102, %p103
    %p105 = scmp.ne.s32.totalorder %s91, %s92
    %p106 = scmp.eq.s32.totalorder %s16, 1
    %p107 = por %p105, %p106
    %p109 = scmp.ne.s32.totalorder %s92, %s108
    %p110 = scmp.eq.s32.totalorder %s16, 0
    %p111 = por %p109, %p110
    %p112 = scmp.le.s32.totalorder 1, %s10
    %p113 = scmp.lt.s32.totalorder %s10, 3
    %p114 = pnand %p112, %p113
    %p115 = pneg %p114
    // Predicated region
    $region9: #{mlp_forward.1} parent=5 // pred_check
      _
    $region10: #{mlp_forward.1} parent=5 // pred_check_branch
      %117 = sbr.rel (%p114) target = $region12
    $region11: #{mlp_forward.1} parent=5 // pred_region
      %s118 = ssub.s32 %s10, 1
      // Predicated region
      $region13: #{mlp_forward.1} parent=11 // pred_check
        %p119 = pneg %p57
      $region14: #{mlp_forward.1} parent=11 // pred_check_branch
        %121 = sbr.rel (%p119) target = $region16
      $region15: #{mlp_forward.1} parent=11 // pred_region
        _
      $region16: #{mlp_forward.1} parent=11 // pred_fallthru
        _
      // Predicated region
      $region17: #{mlp_forward.1} parent=11 // pred_check
        %p122 = pneg %p78
      $region18: #{mlp_forward.1} parent=11 // pred_check_branch
        %124 = sbr.rel (%p122) target = $region20
      $region19: #{mlp_forward.1} parent=11 // pred_region
        _
      $region20: #{mlp_forward.1} parent=11 // pred_fallthru
        _
    $region12: #{mlp_forward.1} parent=5 // pred_fallthru
      _
    %p125 = scmp.lt.s32.totalorder %s10, 2
    // Predicated region
    $region21: #{mlp_forward.1} parent=5 // pred_check
      %p126 = pneg %p125
    $region22: #{mlp_forward.1} parent=5 // pred_check_branch
      %128 = sbr.rel (%p126) target = $region24
    $region23: #{mlp_forward.1} parent=5 // pred_region
      // Predicated region
      $region25: #{mlp_forward.1} parent=23 // pred_check
        %p129 = pneg %p30
      $region26: #{mlp_forward.1} parent=23 // pred_check_branch
        %131 = sbr.rel (%p129) target = $region28
      $region27: #{mlp_forward.1} parent=23 // pred_region
        %s132 = smul.u32 4, %s10
        %p133 = scmp.lt.s32.totalorder %s132, 7
        %s134 = scalar_select %p133, %s132, 7
        %s135 = smul.addr %s134, 8
        %s136 = scalar_lea.vmem %s0, %s135
        %s137 = smul.u32 4, %s10
      $region28: #{mlp_forward.1} parent=23 // pred_fallthru
        _
    $region24: #{mlp_forward.1} parent=5 // pred_fallthru
      _
    %p138 = scmp.le.s32.totalorder 1, %s10
    %p139 = scmp.lt.s32.totalorder %s10, 3
    %p140 = pnand %p138, %p139
    %p141 = pneg %p140
    // Predicated region
    $region29: #{mlp_forward.1} parent=5 // pred_check
      _
    $region30: #{mlp_forward.1} parent=5 // pred_check_branch
      %143 = sbr.rel (%p140) target = $region32
    $region31: #{mlp_forward.1} parent=5 // pred_region
      %s144 = ssub.s32 %s10, 1
      %s145 = smul.u32 4, %s15
      %p146 = scmp.lt.s32.totalorder %s145, 7
      %s147 = scalar_select %p146, %s145, 7
      %s148 = smul.addr %s147, 8
      %s149 = scalar_lea.vmem %s0, %s148
      %p150 = pneg %p36
      %p151 = pneg %p33
      %p152 = pneg %p57
      %p153 = pneg %p54
      %p154 = pneg %p78
      %p155 = pneg %p75
      %p156 = pneg %p104
      %p157 = pneg %p101
      %s158 = smul.u32 4, %s15
      %p159 = scmp.lt.s32.totalorder %s158, 7
      %s160 = scalar_select %p159, %s158, 7
      %s161 = smul.addr %s160, 8
      %s162 = scalar_lea.vmem %s3, %s161
      %s163 = smul.u32 4, %s15
      %p164 = scmp.lt.s32.totalorder %s163, 7
      %s165 = scalar_select %p164, %s163, 7
      %s166 = smul.addr %s165, 8
      %s167 = scalar_lea.vmem %s0, %s166
      %s168 = smul.u32 4, %s15
      %s169 = smul.u32 4, %s15
      %p170 = scmp.lt.s32.totalorder %s169, 7
      %s171 = scalar_select %p170, %s169, 7
      %s172 = smul.addr %s171, 8
      %s173 = scalar_lea.vmem %s3, %s172
      %s174 = smul.u32 4, %s15
      %v175 = vld [vmem:[%s167] sm:$0xff]
      %v176 = vld [vmem:[%s167 + $0x8] sm:$0xff]
      %v177 = vld [vmem:[%s167 + $0x10] sm:$0xff]
      %v178 = vld [vmem:[%s167 + $0x18] sm:$0xff]
      %v179 = vld [vmem:[%s1] sm:$0xff]
      %v180 = vld [vmem:[%s1 + $0x8] sm:$0xff]
      %v181 = vld [vmem:[%s1 + $0x10] sm:$0xff]
      %v182 = vld [vmem:[%s1 + $0x18] sm:$0xff]
      %s183 = sld [smem:[#allocation2]]
      %v184 = vstv %s183
      %vm185 = vcmask 261120
      %v187 = vsel %vm185, %v175, 0
      %v190 = vsel %vm185, %v176, 0
      %v193 = vsel %vm185, %v177, 0
      %v196 = vsel %vm185, %v178, 0
      %198 = vmatprep.subr.mxu0 0.0
      %199 = vmatpush1.msra.mxu0 0.0
      %200 = vmatprep.subr.mxu0 0.0
      %201 = vmatpush1.msra.mxu0 0.0
      %202 = vmatprep.subr.mxu0 0.0
      %203 = vmatpush1.msra.mxu0 0.0
      %204 = vmatprep.subr.mxu0 0.0
      %205 = vmatpush1.msra.mxu0 0.0
      %206 = vmatprep.subr.mxu0 0.0
      %207 = vmatpush1.msra.mxu0 0.0
      %208 = vmatprep.subr.mxu0 0.0
      %209 = vmatpush1.msra.mxu0 0.0
      %210 = vmatprep.subr.mxu0 0.0
      %211 = vmatpush1.msra.mxu0 0.0
      %212 = vmatprep.subr.mxu0 0.0
      %213 = vmatpush1.msra.mxu0 0.0
      %214 = vmatprep.subr.mxu0 0.0
      %215 = vmatpush1.msra.mxu0 0.0
      %216 = vmatprep.subr.mxu0 0.0
      %217 = vmatpush1.msra.mxu0 0.0
      %218 = vmatprep.subr.mxu0 0.0
      %219 = vmatpush1.msra.mxu0 0.0
      %220 = vmatprep.subr.mxu0 0.0
      %221 = vmatpush1.msra.mxu0 0.0
      %222 = vmatprep.subr.mxu0 0.0
      %223 = vmatpush1.msra.mxu0 %v182
      %224 = vmatprep.subr.mxu0 0.0
      %225 = vmatpush1.msra.mxu0 %v181
      %226 = vmatprep.subr.mxu0 0.0
      %227 = vmatpush1.msra.mxu0 %v180
      %228 = vmatprep.subr.mxu0 0.0
      %229 = vmatpush1.msra.mxu0 %v179
      %230 = vmatprep.subr.mxu0 0.0
      %231 = vmatpush2.msra.mxu0 0.0
      %232 = vmatprep.subr.mxu0 0.0
      %233 = vmatpush2.msra.mxu0 0.0
      %234 = vmatprep.subr.mxu0 0.0
      %235 = vmatpush2.msra.mxu0 0.0
      %236 = vmatprep.subr.mxu0 0.0
      %237 = vmatpush2.msra.mxu0 0.0
      %238 = vmatprep.subr.mxu0 0.0
      %239 = vmatpush2.msra.mxu0 0.0
      %240 = vmatprep.subr.mxu0 0.0
      %241 = vmatpush2.msra.mxu0 0.0
      %242 = vmatprep.subr.mxu0 0.0
      %243 = vmatpush2.msra.mxu0 0.0
      %244 = vmatprep.subr.mxu0 0.0
      %245 = vmatpush2.msra.mxu0 0.0
      %246 = vmatprep.subr.mxu0 0.0
      %247 = vmatpush2.msra.mxu0 0.0
      %248 = vmatprep.subr.mxu0 0.0
      %249 = vmatpush2.msra.mxu0 0.0
      %250 = vmatprep.subr.mxu0 0.0
      %251 = vmatpush2.msra.mxu0 0.0
      %252 = vmatprep.subr.mxu0 0.0
      %253 = vmatpush2.msra.mxu0 0.0
      %254 = vmatprep.subr.mxu0 0.0
      %255 = vmatpush2.msra.mxu0 0.0
      %256 = vmatprep.subr.mxu0 0.0
      %257 = vmatpush2.msra.mxu0 0.0
      %258 = vmatprep.subr.mxu0 0.0
      %259 = vmatpush2.msra.mxu0 0.0
      %260 = vmatprep.subr.mxu0 0.0
      %261 = vmatpush2.msra.mxu0 0.0
      %262 = vmatprep.mubr.f32.mxu0 0.0
      %263 = vmatmul.mubr.f32.gmra.mxu0 %v187
      %v264 = vpop.f32.mrf.mxu0
      %v265 = vadd.f32 %v184, %v264
      %v266 = vpop.f32.mrf.mxu0
      %267 = vmatprep.mubr.f32.mxu0 0.0
      %268 = vmatmul.mubr.f32.gmra.mxu0 %v190
      %v269 = vpop.f32.mrf.mxu0
      %v270 = vadd.f32 %v184, %v269
      %v271 = vpop.f32.mrf.mxu0
      %272 = vmatprep.mubr.f32.mxu0 0.0
      %273 = vmatmul.mubr.f32.gmra.mxu0 %v193
      %v274 = vpop.f32.mrf.mxu0
      %v275 = vadd.f32 %v184, %v274
      %v276 = vpop.f32.mrf.mxu0
      %277 = vmatprep.mubr.f32.mxu0 0.0
      %278 = vmatmul.mubr.f32.gmra.mxu0 %v196
      %v279 = vpop.f32.mrf.mxu0
      %v280 = vadd.f32 %v184, %v279
      %v281 = vpop.f32.mrf.mxu0
      %282 = vdwg.mxu0
      %vm283 = vcmask 7168
      %284 = vst.msk [vmem:[%s173] sm:$0xff] %vm283, %v265
      %285 = vst.msk [vmem:[%s173 + $0x8] sm:$0xff] %vm283, %v270
      %286 = vst.msk [vmem:[%s173 + $0x10] sm:$0xff] %vm283, %v275
      %287 = vst.msk [vmem:[%s173 + $0x18] sm:$0xff] %vm283, %v280
      %s288 = smul.u32 4, %s15
      %p289 = scmp.lt.s32.totalorder %s288, 7
      %s290 = scalar_select %p289, %s288, 7
      %s291 = smul.addr %s290, 8
      %s292 = scalar_lea.vmem %s3, %s291
      // Predicated region
      $region33: #{mlp_forward.1} parent=31 // pred_check
        %p293 = pneg %p101
      $region34: #{mlp_forward.1} parent=31 // pred_check_branch
        %295 = sbr.rel (%p293) target = $region36
      $region35: #{mlp_forward.1} parent=31 // pred_region
        %s296 = smul.u32 4, %s15
      $region36: #{mlp_forward.1} parent=31 // pred_fallthru
        _
    $region32: #{mlp_forward.1} parent=5 // pred_fallthru
      _
    %p297 = scmp.le.s32.totalorder 2, %s10
    // Predicated region
    $region37: #{mlp_forward.1} parent=5 // pred_check
      %p298 = pneg %p297
    $region38: #{mlp_forward.1} parent=5 // pred_check_branch
      %300 = sbr.rel (%p298) target = $region40
    $region39: #{mlp_forward.1} parent=5 // pred_region
      %s301 = ssub.s32 %s10, 2
      // Predicated region
      $region41: #{mlp_forward.1} parent=39 // pred_check
        %p302 = pneg %p107
      $region42: #{mlp_forward.1} parent=39 // pred_check_branch
        %304 = sbr.rel (%p302) target = $region44
      $region43: #{mlp_forward.1} parent=39 // pred_region
        %s305 = smul.u32 4, %s16
        %p306 = scmp.lt.s32.totalorder %s305, 7
        %s307 = scalar_select %p306, %s305, 7
        %s308 = smul.addr %s307, 8
        %s309 = scalar_lea.vmem %s3, %s308
      $region44: #{mlp_forward.1} parent=39 // pred_fallthru
        _
    $region40: #{mlp_forward.1} parent=5 // pred_fallthru
      _
  $region6: #{mlp_forward.1} parent=0 // loop_footer
    %s14 = sadd.s32 1, %s10
  $region7: #{mlp_forward.1} parent=0 // loop_footer_branch
    %9 = sbr.rel target = $region3
  $region8: #{mlp_forward.1} parent=0 // loop_exit
    _

</llo_original>
